<compile_context>
chip_gen: v7x
topology: tpu7x:2x2x1
jax: 0.10.0
libtpu: 0.0.40
codegen_flags: <defaults>
</compile_context>

<pallas_src>
import numpy as np
import jax
import jax.numpy as jnp
from jax.experimental import pallas as pl
from jax.experimental.pallas import tpu as pltpu


# ---------------------------------------------------------------------------
# Packed-layout constants.
# Weight slab: [W_ROWS, 256] bf16.  128-wide layers use lanes 0:128 only.
# All row-block offsets are multiples of 16 (bf16 sublane tile = 16 rows).
# ---------------------------------------------------------------------------
W_COLS = 256          # slab lane width
F_PAD = 16            # padded input-feature dim (rows of W1), bf16-tile aligned
H1_PAD = 256          # h1 = 200 padded
H2_PAD = 128          # h2 = 100 padded (narrowed from 256 per perf review)
OUT_PAD = 128         # output slab lane width (heads in lanes 0..3)

_R1 = (0, F_PAD)                       # shared Linear 1:  [16, 256]
_R2 = (_R1[1], _R1[1] + H1_PAD)        # shared Linear 2:  [256, 128]
_R3 = (_R2[1], _R2[1] + H2_PAD)        # fused head layer 1 (concat):     [128, 256]
_R4 = (_R3[1], _R3[1] + 256)           # fused head layer 2 (block-diag): [256, 256]
_R5 = (_R4[1], _R4[1] + 256)           # fused head layer 3 (block-diag): [256, 128]
W_ROWS = _R5[1]                        # 912 rows (multiple of 16)
B_ROWS = 8                             # 5 bias rows, padded to a sublane multiple


# ---------------------------------------------------------------------------
# Kernel: one batch tile, whole network.  5 MXU matmuls, params VMEM-resident.
# ---------------------------------------------------------------------------
def _deep_balanced_kernel(x_ref, w_ref, b_ref, out_ref):
    def mm(h, rows, cols):
        r0, r1 = rows
        w = w_ref[r0:r1, 0:cols]                    # static, tile-aligned slice (bf16)
        return jnp.dot(h.astype(jnp.bfloat16), w,
                       preferred_element_type=jnp.float32)

    x = x_ref[...]                                                       # (tb, 16) f32
    h = jnp.maximum(mm(x, _R1, 256) + b_ref[0:1, 0:256], 0.0)            # (tb, 256)
    h = jnp.maximum(mm(h, _R2, 128) + b_ref[1:2, 0:128], 0.0)            # (tb, 128)
    z = jnp.maximum(mm(h, _R3, 256) + b_ref[2:3, 0:256], 0.0)            # (tb, 256)
    z = jnp.maximum(mm(z, _R4, 256) + b_ref[3:4, 0:256], 0.0)            # (tb, 256)
    out = mm(z, _R5, 128) + b_ref[4:5, 0:128]                            # (tb, 128)
    out_ref[...] = out.astype(out_ref.dtype)


# ---------------------------------------------------------------------------
# Wrapper: batch tiling, lane-dense 128-wide output, cost estimate.
# ---------------------------------------------------------------------------
def _round_up(n, m):
    return ((n + m - 1) // m) * m


def _choose_tile(batch):
    if batch < 256:
        # Small / latency-bound: one grid step (per-step overhead dominates).
        return max(8, _round_up(batch, 8))
    # Large: split into >= 2 grid steps so v7x's two TensorCores both get work,
    # cap tile so the whole footprint stays a few MiB of VMEM.
    half = _round_up((batch + 1) // 2, 8)
    return min(half, 1024)


def deep_balanced_forward(x, w_packed, b_packed):
    """x: [B, input_size] float32.  Returns (energy, cost, emission, comfort),
    each [B, 1] float32.  w_packed/b_packed come from pack_params (built once)."""
    batch, fdim = x.shape
    assert fdim <= F_PAD

    tile_b = _choose_tile(batch)
    padded_b = _round_up(batch, tile_b)

    # Single fused pad (feature axis -> 16, batch axis -> multiple of tile_b).
    x_pad = jnp.pad(x.astype(jnp.float32),
                    ((0, padded_b - batch), (0, F_PAD - fdim)))

    grid = (padded_b // tile_b,)
    macs_per_row = (F_PAD * 256 + 256 * 128 + 128 * 256 + 256 * 256 + 256 * 128)
    flops = 2 * padded_b * macs_per_row
    bytes_accessed = (w_packed.size * 2 + b_packed.size * 4
                      + x_pad.size * 4 + padded_b * OUT_PAD * 4)

    out = pl.pallas_call(
        _deep_balanced_kernel,
        out_shape=jax.ShapeDtypeStruct((padded_b, OUT_PAD), jnp.float32),
        grid=grid,
        in_specs=[
            pl.BlockSpec((tile_b, F_PAD), lambda i: (i, 0)),    # batch tile
            pl.BlockSpec((W_ROWS, W_COLS), lambda i: (0, 0)),   # weights resident
            pl.BlockSpec((B_ROWS, W_COLS), lambda i: (0, 0)),   # biases resident
        ],
        out_specs=pl.BlockSpec((tile_b, OUT_PAD), lambda i: (i, 0)),
        compiler_params=pltpu.CompilerParams(
            dimension_semantics=("parallel",),
            vmem_limit_bytes=32 * 1024 * 1024),
        cost_estimate=pl.CostEstimate(
            flops=flops, transcendentals=0, bytes_accessed=bytes_accessed),
    )(x_pad, w_packed, b_packed)

    out = out[:batch]
    return out[:, 0:1], out[:, 1:2], out[:, 2:3], out[:, 3:4]


# ---------------------------------------------------------------------------
# Parameter construction (PyTorch Linear-style uniform init) and offline packing.
# ---------------------------------------------------------------------------
def _init_linear(key, fan_in, fan_out):
    kw, kb = jax.random.split(key)
    bound = 1.0 / (fan_in ** 0.5)
    w = jax.random.uniform(kw, (fan_in, fan_out), jnp.float32, -bound, bound)
    b = jax.random.uniform(kb, (fan_out,), jnp.float32, -bound, bound)
    return w, b


def make_params(key, input_size=5, h1=200, h2=100, h3=50):
    dims = [
        # shared
        (input_size, h1), (h1, h2),
        # energy: h2 -> h3 -> h3//2 -> 1
        (h2, h3), (h3, h3 // 2), (h3 // 2, 1),
        # cost: h2 -> 2*h3 -> h3 -> 1
        (h2, h3 * 2), (h3 * 2, h3), (h3, 1),
        # emission: h2 -> int(1.5*h3) -> h3 -> 1
        (h2, int(h3 * 1.5)), (int(h3 * 1.5), h3), (h3, 1),
        # comfort: h2 -> h3//2 -> h3//4 -> 1
        (h2, h3 // 2), (h3 // 2, h3 // 4), (h3 // 4, 1),
    ]
    keys = jax.random.split(key, len(dims))
    return [_init_linear(k, fi, fo) for k, (fi, fo) in zip(keys, dims)]


def pack_params(params, input_size=5, h1=200, h2=100, h3=50):
    """Pack the 14 Linear layers into one [W_ROWS, 256] bf16 weight slab and one
    [B_ROWS, 256] f32 bias slab.  Head layers are fused: layer-1 concatenated
    along the out axis, layers 2/3 block-diagonal; final outputs land in lanes
    0..3 of a 128-wide slab.  Called once at init time."""
    l1_out = [h3, 2 * h3, int(1.5 * h3), h3 // 2]   # 50, 100, 75, 25  (sum 250)
    l2_out = [h3 // 2, h3, h3, h3 // 4]             # 25, 50, 50, 12   (sum 137)
    assert sum(l1_out) <= 256 and sum(l2_out) <= 256
    assert input_size <= F_PAD and h1 <= H1_PAD and h2 <= H2_PAD

    W = np.zeros((W_ROWS, W_COLS), np.float32)
    B = np.zeros((B_ROWS, W_COLS), np.float32)

    (ws1, bs1), (ws2, bs2) = params[0], params[1]
    heads = [params[2:5], params[5:8], params[8:11], params[11:14]]

    # Shared trunk.
    W[_R1[0]:_R1[0] + input_size, 0:h1] = np.asarray(ws1)
    B[0, 0:h1] = np.asarray(bs1)
    W[_R2[0]:_R2[0] + h1, 0:h2] = np.asarray(ws2)
    B[1, 0:h2] = np.asarray(bs2)

    # Fused head layer 1: concat along the output (lane) axis.
    col = 0
    for (w, b), width in zip([hd[0] for hd in heads], l1_out):
        W[_R3[0]:_R3[0] + h2, col:col + width] = np.asarray(w)
        B[2, col:col + width] = np.asarray(b)
        col += width

    # Fused head layer 2: block-diagonal (no cross-head mixing).
    row, col = 0, 0
    for (w, b), in_w, out_w in zip([hd[1] for hd in heads], l1_out, l2_out):
        W[_R4[0] + row:_R4[0] + row + in_w, col:col + out_w] = np.asarray(w)
        B[3, col:col + out_w] = np.asarray(b)
        row += in_w
        col += out_w

    # Fused head layer 3: block-diagonal, outputs land in lanes 0..3 (<128 wide).
    row = 0
    for t, ((w, b), in_w) in enumerate(zip([hd[2] for hd in heads], l2_out)):
        W[_R5[0] + row:_R5[0] + row + in_w, t] = np.asarray(w).reshape(in_w)
        B[4, t] = float(np.asarray(b).reshape(()))
        row += in_w

    # bf16 weights (halves the weight DMA; MXU consumes bf16 at default precision
    # anyway), f32 biases (tiny, added post-accumulation).
    return jnp.asarray(W, dtype=jnp.bfloat16), jnp.asarray(B, dtype=jnp.float32)


# ---------------------------------------------------------------------------
# Pure-JAX reference (unfused, f32 params) for correctness checking.
# ---------------------------------------------------------------------------
def _reference_forward(x, params):
    def lin(h, w, b):
        return h @ w + b

    h = jnp.maximum(lin(x, *params[0]), 0.0)
    h = jnp.maximum(lin(h, *params[1]), 0.0)
    outs = []
    for t in range(4):
        p = params[2 + 3 * t: 5 + 3 * t]
        z = jnp.maximum(lin(h, *p[0]), 0.0)
        z = jnp.maximum(lin(z, *p[1]), 0.0)
        outs.append(lin(z, *p[2]))
    return tuple(outs)


if __name__ == "__main__":
    key = jax.random.PRNGKey(0)
    kx, kp = jax.random.split(key)

    batch, input_size = 8, 5
    x = jax.random.normal(kx, (batch, input_size), dtype=jnp.float32)
    params = make_params(kp, input_size=input_size)

    # Pack/fuse weights ONCE at param-init time (not per forward call).
    w_packed, b_packed = pack_params(params, input_size=input_size)

    fwd = jax.jit(deep_balanced_forward)
    outs = jax.block_until_ready(fwd(x, w_packed, b_packed))

    refs = _reference_forward(x, params)
    names = ("energy", "cost", "emission", "comfort")
    for name, o, r in zip(names, outs, refs):
        assert o.shape == (batch, 1), (name, o.shape)
        # bf16 weight storage / bf16 MXU operands => compare at bf16 precision.
        assert jnp.allclose(o, r, atol=1e-2, rtol=1e-2), (
            name, float(jnp.max(jnp.abs(o - r))))

    # TODO(synk): Dropout is identity (eval semantics); training-mode dropout would
    # use pltpu.prng_seed/prng_random_bits.  log_sigma only weights the loss.
    print("KERNEL_OK")
</pallas_src>

<mosaic_0001>
module attributes {stable_mosaic.version = 11 : i64} {
  func.func @_deep_balanced_kernel(%arg0: i32, %arg1: memref<8x16xf32, #tpu.memory_space<vmem>>, %arg2: memref<912x256xbf16, #tpu.memory_space<vmem>>, %arg3: memref<8x256xf32, #tpu.memory_space<vmem>>, %arg4: memref<8x128xf32, #tpu.memory_space<vmem>>) attributes {dimension_semantics = [#tpu.dimension_semantics<parallel>], iteration_bounds = array<i64: 1>, scalar_prefetch = 0 : i64, scratch_operands = 0 : i64, tpu.core_type = #tpu.core_type<tc>, window_params = [{transform_indices = @transform_0, window_bounds = array<i64: 8, 16>}, {pipeline_mode = #tpu.pipeline_mode<synchronous>, transform_indices = @transform_1, window_bounds = array<i64: 912, 256>}, {pipeline_mode = #tpu.pipeline_mode<synchronous>, transform_indices = @transform_2, window_bounds = array<i64: 8, 256>}, {transform_indices = @transform_3, window_bounds = array<i64: 8, 128>}]} {
    %c0 = arith.constant 0 : index
    %c0_0 = arith.constant 0 : index
    %0 = vector.load %arg1[%c0, %c0_0] : memref<8x16xf32, #tpu.memory_space<vmem>>, vector<8x16xf32>
    %c0_1 = arith.constant 0 : index
    %c0_2 = arith.constant 0 : index
    %1 = vector.load %arg2[%c0_1, %c0_2] : memref<912x256xbf16, #tpu.memory_space<vmem>>, vector<16x256xbf16>
    %2 = arith.truncf %0 : vector<8x16xf32> to vector<8x16xbf16>
    %cst = arith.constant dense<0.000000e+00> : vector<8x256xf32>
    %3 = tpu.matmul %2, %1, %cst {dimension_numbers = #tpu.dot_dimension_numbers<[1], [0], [0], [1], [0, 0, 1, 1], [], []>} : vector<8x16xbf16>, vector<16x256xbf16>, vector<8x256xf32> -> vector<8x256xf32>
    %c0_3 = arith.constant 0 : index
    %c0_4 = arith.constant 0 : index
    %4 = vector.load %arg3[%c0_3, %c0_4] : memref<8x256xf32, #tpu.memory_space<vmem>>, vector<1x256xf32>
    %5 = vector.broadcast %4 : vector<1x256xf32> to vector<8x256xf32>
    %6 = arith.addf %3, %5 : vector<8x256xf32>
    %cst_5 = arith.constant 0.000000e+00 : f32
    %7 = vector.broadcast %cst_5 : f32 to vector<8x256xf32>
    %8 = arith.maximumf %6, %7 : vector<8x256xf32>
    %c16 = arith.constant 16 : index
    %c0_6 = arith.constant 0 : index
    %9 = vector.load %arg2[%c16, %c0_6] : memref<912x256xbf16, #tpu.memory_space<vmem>>, vector<256x128xbf16>
    %10 = arith.truncf %8 : vector<8x256xf32> to vector<8x256xbf16>
    %cst_7 = arith.constant dense<0.000000e+00> : vector<8x128xf32>
    %11 = tpu.matmul %10, %9, %cst_7 {dimension_numbers = #tpu.dot_dimension_numbers<[1], [0], [0], [1], [0, 0, 1, 1], [], []>} : vector<8x256xbf16>, vector<256x128xbf16>, vector<8x128xf32> -> vector<8x128xf32>
    %c1 = arith.constant 1 : index
    %c0_8 = arith.constant 0 : index
    %12 = vector.load %arg3[%c1, %c0_8] : memref<8x256xf32, #tpu.memory_space<vmem>>, vector<1x128xf32>
    %13 = vector.broadcast %12 : vector<1x128xf32> to vector<8x128xf32>
    %14 = arith.addf %11, %13 : vector<8x128xf32>
    %cst_9 = arith.constant 0.000000e+00 : f32
    %15 = vector.broadcast %cst_9 : f32 to vector<8x128xf32>
    %16 = arith.maximumf %14, %15 : vector<8x128xf32>
    %c272 = arith.constant 272 : index
    %c0_10 = arith.constant 0 : index
    %17 = vector.load %arg2[%c272, %c0_10] : memref<912x256xbf16, #tpu.memory_space<vmem>>, vector<128x256xbf16>
    %18 = arith.truncf %16 : vector<8x128xf32> to vector<8x128xbf16>
    %cst_11 = arith.constant dense<0.000000e+00> : vector<8x256xf32>
    %19 = tpu.matmul %18, %17, %cst_11 {dimension_numbers = #tpu.dot_dimension_numbers<[1], [0], [0], [1], [0, 0, 1, 1], [], []>} : vector<8x128xbf16>, vector<128x256xbf16>, vector<8x256xf32> -> vector<8x256xf32>
    %c2 = arith.constant 2 : index
    %c0_12 = arith.constant 0 : index
    %20 = vector.load %arg3[%c2, %c0_12] : memref<8x256xf32, #tpu.memory_space<vmem>>, vector<1x256xf32>
    %21 = vector.broadcast %20 : vector<1x256xf32> to vector<8x256xf32>
    %22 = arith.addf %19, %21 : vector<8x256xf32>
    %cst_13 = arith.constant 0.000000e+00 : f32
    %23 = vector.broadcast %cst_13 : f32 to vector<8x256xf32>
    %24 = arith.maximumf %22, %23 : vector<8x256xf32>
    %c400 = arith.constant 400 : index
    %c0_14 = arith.constant 0 : index
    %25 = vector.load %arg2[%c400, %c0_14] : memref<912x256xbf16, #tpu.memory_space<vmem>>, vector<256x256xbf16>
    %26 = arith.truncf %24 : vector<8x256xf32> to vector<8x256xbf16>
    %cst_15 = arith.constant dense<0.000000e+00> : vector<8x256xf32>
    %27 = tpu.matmul %26, %25, %cst_15 {dimension_numbers = #tpu.dot_dimension_numbers<[1], [0], [0], [1], [0, 0, 1, 1], [], []>} : vector<8x256xbf16>, vector<256x256xbf16>, vector<8x256xf32> -> vector<8x256xf32>
    %c3 = arith.constant 3 : index
    %c0_16 = arith.constant 0 : index
    %28 = vector.load %arg3[%c3, %c0_16] : memref<8x256xf32, #tpu.memory_space<vmem>>, vector<1x256xf32>
    %29 = vector.broadcast %28 : vector<1x256xf32> to vector<8x256xf32>
    %30 = arith.addf %27, %29 : vector<8x256xf32>
    %cst_17 = arith.constant 0.000000e+00 : f32
    %31 = vector.broadcast %cst_17 : f32 to vector<8x256xf32>
    %32 = arith.maximumf %30, %31 : vector<8x256xf32>
    %c656 = arith.constant 656 : index
    %c0_18 = arith.constant 0 : index
    %33 = vector.load %arg2[%c656, %c0_18] : memref<912x256xbf16, #tpu.memory_space<vmem>>, vector<256x128xbf16>
    %34 = arith.truncf %32 : vector<8x256xf32> to vector<8x256xbf16>
    %cst_19 = arith.constant dense<0.000000e+00> : vector<8x128xf32>
    %35 = tpu.matmul %34, %33, %cst_19 {dimension_numbers = #tpu.dot_dimension_numbers<[1], [0], [0], [1], [0, 0, 1, 1], [], []>} : vector<8x256xbf16>, vector<256x128xbf16>, vector<8x128xf32> -> vector<8x128xf32>
    %c4 = arith.constant 4 : index
    %c0_20 = arith.constant 0 : index
    %36 = vector.load %arg3[%c4, %c0_20] : memref<8x256xf32, #tpu.memory_space<vmem>>, vector<1x128xf32>
    %37 = vector.broadcast %36 : vector<1x128xf32> to vector<8x128xf32>
    %38 = arith.addf %35, %37 : vector<8x128xf32>
    %c0_21 = arith.constant 0 : index
    %c0_22 = arith.constant 0 : index
    %39 = vector.load %arg4[%c0_21, %c0_22] : memref<8x128xf32, #tpu.memory_space<vmem>>, vector<8x128xf32>
    tpu.vector_store %arg4[%c0_21, %c0_22], %38 {strides = array<i32>} : memref<8x128xf32, #tpu.memory_space<vmem>>, vector<8x128xf32>,
    return
  }
  func.func @transform_0(%arg0: i32) -> (i32, i32) {
    %c0_i32 = arith.constant 0 : i32
    %c0_i32_0 = arith.constant 0 : i32
    return %arg0, %c0_i32 : i32, i32
  }
  func.func @transform_1(%arg0: i32) -> (i32, i32) {
    %c0_i32 = arith.constant 0 : i32
    %c0_i32_0 = arith.constant 0 : i32
    %c0_i32_1 = arith.constant 0 : i32
    return %c0_i32, %c0_i32_0 : i32, i32
  }
  func.func @transform_2(%arg0: i32) -> (i32, i32) {
    %c0_i32 = arith.constant 0 : i32
    %c0_i32_0 = arith.constant 0 : i32
    %c0_i32_1 = arith.constant 0 : i32
    return %c0_i32, %c0_i32_0 : i32, i32
  }
  func.func @transform_3(%arg0: i32) -> (i32, i32) {
    %c0_i32 = arith.constant 0 : i32
    %c0_i32_0 = arith.constant 0 : i32
    return %arg0, %c0_i32 : i32, i32
  }
}

</mosaic_0001>

<llo_original>
// kernel: deep_balanced_forward.1
$region0: #{deep_balanced_forward.1}
  #allocation0 [shape = 'u32[]', space=smem, size = 0x4, offset = 0x4, fixed_abs, tag = 'smem constant byte address 0x4 - core index']
  #allocation1 [shape = 'u32[144,128]{1,0:T(1,128)}', space=vmem, size = 0x12000, scoped, tag = 'internal scratch']
  %s0 = inlined_call_operand.vmem [shape: f32[8,16], index: 0, kind: input, shape index: {}]
  %s1 = inlined_call_operand.hbm [shape: bf16[912,256], index: 1, kind: input, shape index: {}]
  %s2 = inlined_call_operand.vmem [shape: f32[8,256], index: 2, kind: input, shape index: {}]
  %s3 = inlined_call_operand.vmem [shape: f32[8,128], index: 3, kind: output, shape index: {}]
  %s4 = sld [smem:[#allocation0]]
  $region26: #{deep_balanced_forward.1} parent=0
    _
  %s6 = ssub.s32 1, %s4
  %s7 = scalar_select 0, %s6, %s4
  $region1: #{deep_balanced_forward.1} parent=0
    #allocation2 [shape = 'u8[466944]{0}', space=vmem, size = 0x72000, scoped, tag = 'input window, operand 1, single buffered']
    #allocation3 [shape = 's32[1]{0}', space=sflag, size = 0x4, scoped, tag = 'scoped memory for deep_balanced_forward.1']
    %8 = vsyncpa [#allocation3], 0
    // Predicated region
    $region2: #{deep_balanced_forward.1} parent=1 // pred_check
      _
    $region3: #{deep_balanced_forward.1} parent=1 // pred_check_branch
      %10 = sbr.rel (0) target = $region5
    $region4: #{deep_balanced_forward.1} parent=1 // pred_region
      _
    $region5: #{deep_balanced_forward.1} parent=1 // pred_fallthru
      _
    // Predicated region
    $region6: #{deep_balanced_forward.1} parent=1 // pred_check
      _
    $region7: #{deep_balanced_forward.1} parent=1 // pred_check_branch
      %12 = sbr.rel (0) target = $region9
    $region8: #{deep_balanced_forward.1} parent=1 // pred_region
      %s14 = ssub.s32 14592, 14592
      %15 = vsyncadd [#allocation3], %s14
      %s16 = sshll.u32 [#allocation2], 4
      %s17 = int_to_ptr.vmem [resolvable:$true] %s16
      %22 = dma.hbm_to_vmem [thread:$0]  %s1, 14592, %s17, [#allocation3], 128, 128, 8
    $region9: #{deep_balanced_forward.1} parent=1 // pred_fallthru
      _
    // Predicated region
    $region10: #{deep_balanced_forward.1} parent=1 // pred_check
      _
    $region11: #{deep_balanced_forward.1} parent=1 // pred_check_branch
      %24 = sbr.rel (0) target = $region13
    $region12: #{deep_balanced_forward.1} parent=1 // pred_region
      _
    $region13: #{deep_balanced_forward.1} parent=1 // pred_fallthru
      _
    // Predicated region
    $region14: #{deep_balanced_forward.1} parent=1 // pred_check
      _
    $region15: #{deep_balanced_forward.1} parent=1 // pred_check_branch
      %26 = sbr.rel (0) target = $region17
    $region16: #{deep_balanced_forward.1} parent=1 // pred_region
      %27 = dma.done [#allocation3], 14592
    $region17: #{deep_balanced_forward.1} parent=1 // pred_fallthru
      _
    %v29 = vld [vmem:[%s0] sm:$0xff]
    %v30 = vld [vmem:[#allocation2] sm:$0xff]
    %v31 = vld [vmem:[#allocation2 + $0x8] sm:$0xff]
    %v32 = vpack.c.bf16 %v29, %v29
    %v33 = vld [vmem:[%s2] ss:$8 sm:$0x3]
    %v35 = vlaneseq
    %v36 = vshrl.u32 %v35, 7
    %v37 = vsub.s32 0, %v36
    %v38 = vrot.slane %v33, %v37
    %v39 = vlaneseq
    %v40 = vshrl.u32 %v39, 7
    %v41 = vsub.s32 1, %v40
    %v42 = vrot.slane %v33, %v41
    %v47 = vunpack.c.l.b16 %v30
    %v48 = vunpack.c.h.b16 %v30
    %v49 = vunpack.c.l.b16 %v31
    %v50 = vunpack.c.h.b16 %v31
    %v51 = vpack.c.b16 %v49, %v47
    %v52 = vpack.c.b16 %v50, %v48
    %vm55 = vcmask 130048
    %v57 = vsel %vm55, %v32, 0
    %59 = vmatprep.subr.bf16.mxu0 %v52
    %60 = vmatpush1.bf16.msra.mxu0 %v51
    %61 = vmatprep.subr.bf16.mxu0 0
    %62 = vmatpush1.bf16.msra.mxu0 0
    %63 = vmatprep.subr.bf16.mxu0 0
    %64 = vmatpush1.bf16.msra.mxu0 0
    %65 = vmatprep.subr.bf16.mxu0 0
    %66 = vmatpush1.bf16.msra.mxu0 0
    %67 = vmatprep.subr.bf16.mxu0 0
    %68 = vmatpush1.bf16.msra.mxu0 0
    %69 = vmatprep.subr.bf16.mxu0 0
    %70 = vmatpush1.bf16.msra.mxu0 0
    %71 = vmatprep.subr.bf16.mxu0 0
    %72 = vmatpush1.bf16.msra.mxu0 0
    %73 = vmatprep.subr.bf16.mxu0 0
    %74 = vmatpush1.bf16.msra.mxu0 0
    %75 = vmatprep.subr.bf16.mxu0 0
    %76 = vmatpush1.bf16.msra.mxu0 0
    %77 = vmatprep.subr.bf16.mxu0 0
    %78 = vmatpush1.bf16.msra.mxu0 0
    %79 = vmatprep.subr.bf16.mxu0 0
    %80 = vmatpush1.bf16.msra.mxu0 0
    %81 = vmatprep.subr.bf16.mxu0 0
    %82 = vmatpush1.bf16.msra.mxu0 0
    %83 = vmatprep.subr.bf16.mxu0 0
    %84 = vmatpush1.bf16.msra.mxu0 0
    %85 = vmatprep.subr.bf16.mxu0 0
    %86 = vmatpush1.bf16.msra.mxu0 0
    %87 = vmatprep.subr.bf16.mxu0 0
    %88 = vmatpush1.bf16.msra.mxu0 0
    %89 = vmatprep.subr.bf16.mxu0 0
    %90 = vmatpush1.bf16.msra.mxu0 0
    %91 = vmatprep.mubr.bf16.mxu0 0
    %92 = vmatmul.mubr.bf16.gmra.mrb[0].mxu0 %v57
    %v93 = vpop.f32.mrb[0].mxu0
    %v94 = vadd.f32 %v38, %v93
    %v95 = vpop.f32.mrb[0].mxu0
    %v96 = vadd.f32 %v42, %v95
    %v97 = vpop.f32.mrb[0].mxu0
    %v98 = vpop.f32.mrb[0].mxu0
    %99 = vdwg.mxu0
    %v100 = vmax.f32 %v94, 0.0
    %v101 = vmax.f32 %v96, 0.0
    %v102 = vld [vmem:[#allocation2 + $0x10] sm:$0xf]
    %v103 = vld [vmem:[#allocation2 + $0x18] sm:$0xf]
    %v104 = vld [vmem:[#allocation2 + $0x20] sm:$0xf]
    %v105 = vld [vmem:[#allocation2 + $0x28] sm:$0xf]
    %v106 = vld [vmem:[#allocation2 + $0x30] sm:$0xf]
    %v107 = vld [vmem:[#allocation2 + $0x38] sm:$0xf]
    %v108 = vld [vmem:[#allocation2 + $0x40] sm:$0xf]
    %v109 = vld [vmem:[#allocation2 + $0x48] sm:$0xf]
    %v110 = vld [vmem:[#allocation2 + $0x50] sm:$0xf]
    %v111 = vld [vmem:[#allocation2 + $0x58] sm:$0xf]
    %v112 = vld [vmem:[#allocation2 + $0x60] sm:$0xf]
    %v113 = vld [vmem:[#allocation2 + $0x68] sm:$0xf]
    %v114 = vld [vmem:[#allocation2 + $0x70] sm:$0xf]
    %v115 = vld [vmem:[#allocation2 + $0x78] sm:$0xf]
    %v116 = vld [vmem:[#allocation2 + $0x80] sm:$0xf]
    %v117 = vld [vmem:[#allocation2 + $0x88] sm:$0xf]
    %v118 = vld [vmem:[#allocation2 + $0x90] sm:$0xf]
    %v119 = vld [vmem:[#allocation2 + $0x98] sm:$0xf]
    %v120 = vld [vmem:[#allocation2 + $0xa0] sm:$0xf]
    %v121 = vld [vmem:[#allocation2 + $0xa8] sm:$0xf]
    %v122 = vld [vmem:[#allocation2 + $0xb0] sm:$0xf]
    %v123 = vld [vmem:[#allocation2 + $0xb8] sm:$0xf]
    %v124 = vld [vmem:[#allocation2 + $0xc0] sm:$0xf]
    %v125 = vld [vmem:[#allocation2 + $0xc8] sm:$0xf]
    %v126 = vld [vmem:[#allocation2 + $0xd0] sm:$0xf]
    %v127 = vld [vmem:[#allocation2 + $0xd8] sm:$0xf]
    %v128 = vld [vmem:[#allocation2 + $0xe0] sm:$0xf]
    %v129 = vld [vmem:[#allocation2 + $0xe8] sm:$0xf]
    %v130 = vld [vmem:[#allocation2 + $0xf0] sm:$0xf]
    %v131 = vld [vmem:[#allocation2 + $0xf8] sm:$0xf]
    %v132 = vld [vmem:[#allocation2 + $0x100] sm:$0xf]
    %v133 = vld [vmem:[#allocation2 + $0x108] sm:$0xf]
    %v134 = vpack.c.bf16 %v100, %v100
    %v135 = vpack.c.bf16 %v101, %v101
    %v136 = vld [vmem:[%s2 + $0x1] ss:$0 sm:$0xff]
    %v169 = vunpack.c.l.b16 %v102
    %v170 = vunpack.c.l.b16 %v103
    %v171 = vunpack.c.l.b16 %v104
    %v172 = vunpack.c.l.b16 %v105
    %v173 = vunpack.c.l.b16 %v106
    %v174 = vunpack.c.l.b16 %v107
    %v175 = vunpack.c.l.b16 %v108
    %v176 = vunpack.c.l.b16 %v109
    %v177 = vunpack.c.l.b16 %v110
    %v178 = vunpack.c.l.b16 %v111
    %v179 = vunpack.c.l.b16 %v112
    %v180 = vunpack.c.l.b16 %v113
    %v181 = vunpack.c.l.b16 %v114
    %v182 = vunpack.c.l.b16 %v115
    %v183 = vunpack.c.l.b16 %v116
    %v184 = vunpack.c.l.b16 %v117
    %v185 = vunpack.c.l.b16 %v118
    %v186 = vunpack.c.l.b16 %v119
    %v187 = vunpack.c.l.b16 %v120
    %v188 = vunpack.c.l.b16 %v121
    %v189 = vunpack.c.l.b16 %v122
    %v190 = vunpack.c.l.b16 %v123
    %v191 = vunpack.c.l.b16 %v124
    %v192 = vunpack.c.l.b16 %v125
    %v193 = vunpack.c.l.b16 %v126
    %v194 = vunpack.c.l.b16 %v127
    %v195 = vunpack.c.l.b16 %v128
    %v196 = vunpack.c.l.b16 %v129
    %v197 = vunpack.c.l.b16 %v130
    %v198 = vunpack.c.l.b16 %v131
    %v199 = vunpack.c.l.b16 %v132
    %v200 = vunpack.c.l.b16 %v133
    %v201 = vpack.c.b16 %v170, %v169
    %v202 = vpack.c.b16 %v172, %v171
    %v203 = vpack.c.b16 %v174, %v173
    %v204 = vpack.c.b16 %v176, %v175
    %v205 = vpack.c.b16 %v178, %v177
    %v206 = vpack.c.b16 %v180, %v179
    %v207 = vpack.c.b16 %v182, %v181
    %v208 = vpack.c.b16 %v184, %v183
    %v209 = vpack.c.b16 %v186, %v185
    %v210 = vpack.c.b16 %v188, %v187
    %v211 = vpack.c.b16 %v190, %v189
    %v212 = vpack.c.b16 %v192, %v191
    %v213 = vpack.c.b16 %v194, %v193
    %v214 = vpack.c.b16 %v196, %v195
    %v215 = vpack.c.b16 %v198, %v197
    %v216 = vpack.c.b16 %v200, %v199
    %233 = vmatprep.subr.bf16.mxu0 0
    %234 = vmatpush1.bf16.msra.mxu0 %v201
    %235 = vmatprep.subr.bf16.mxu0 0
    %236 = vmatpush1.bf16.msra.mxu0 %v202
    %237 = vmatprep.subr.bf16.mxu0 0
    %238 = vmatpush1.bf16.msra.mxu0 %v203
    %239 = vmatprep.subr.bf16.mxu0 0
    %240 = vmatpush1.bf16.msra.mxu0 %v204
    %241 = vmatprep.subr.bf16.mxu0 0
    %242 = vmatpush1.bf16.msra.mxu0 %v205
    %243 = vmatprep.subr.bf16.mxu0 0
    %244 = vmatpush1.bf16.msra.mxu0 %v206
    %245 = vmatprep.subr.bf16.mxu0 0
    %246 = vmatpush1.bf16.msra.mxu0 %v207
    %247 = vmatprep.subr.bf16.mxu0 0
    %248 = vmatpush1.bf16.msra.mxu0 %v208
    %249 = vmatprep.subr.bf16.mxu0 0
    %250 = vmatpush1.bf16.msra.mxu0 %v209
    %251 = vmatprep.subr.bf16.mxu0 0
    %252 = vmatpush1.bf16.msra.mxu0 %v210
    %253 = vmatprep.subr.bf16.mxu0 0
    %254 = vmatpush1.bf16.msra.mxu0 %v211
    %255 = vmatprep.subr.bf16.mxu0 0
    %256 = vmatpush1.bf16.msra.mxu0 %v212
    %257 = vmatprep.subr.bf16.mxu0 0
    %258 = vmatpush1.bf16.msra.mxu0 %v213
    %259 = vmatprep.subr.bf16.mxu0 0
    %260 = vmatpush1.bf16.msra.mxu0 %v214
    %261 = vmatprep.subr.bf16.mxu0 0
    %262 = vmatpush1.bf16.msra.mxu0 %v215
    %263 = vmatprep.subr.bf16.mxu0 0
    %264 = vmatpush1.bf16.msra.mxu0 %v216
    %265 = vmatprep.mubr.bf16.mxu0 %v135
    %266 = vmatmul.mubr.bf16.gmra.mrb[0].mxu0 %v134
    %v267 = vpop.f32.mrb[0].mxu0
    %v268 = vadd.f32 %v136, %v267
    %v269 = vpop.f32.mrb[0].mxu0
    %v270 = vpop.f32.mrb[0].mxu0
    %v271 = vpop.f32.mrb[0].mxu0
    %272 = vdwg.mxu0
    %v273 = vmax.f32 %v268, 0.0
    %v274 = vld [vmem:[#allocation2 + $0x110] sm:$0xff]
    %v275 = vld [vmem:[#allocation2 + $0x118] sm:$0xff]
    %v276 = vld [vmem:[#allocation2 + $0x120] sm:$0xff]
    %v277 = vld [vmem:[#allocation2 + $0x128] sm:$0xff]
    %v278 = vld [vmem:[#allocation2 + $0x130] sm:$0xff]
    %v279 = vld [vmem:[#allocation2 + $0x138] sm:$0xff]
    %v280 = vld [vmem:[#allocation2 + $0x140] sm:$0xff]
    %v281 = vld [vmem:[#allocation2 + $0x148] sm:$0xff]
    %v282 = vld [vmem:[#allocation2 + $0x150] sm:$0xff]
    %v283 = vld [vmem:[#allocation2 + $0x158] sm:$0xff]
    %v284 = vld [vmem:[#allocation2 + $0x160] sm:$0xff]
    %v285 = vld [vmem:[#allocation2 + $0x168] sm:$0xff]
    %v286 = vld [vmem:[#allocation2 + $0x170] sm:$0xff]
    %v287 = vld [vmem:[#allocation2 + $0x178] sm:$0xff]
    %v288 = vld [vmem:[#allocation2 + $0x180] sm:$0xff]
    %v289 = vld [vmem:[#allocation2 + $0x188] sm:$0xff]
    %v290 = vpack.c.bf16 %v273, %v273
    %s291 = scalar_lea.vmem %s2, 2
    %v292 = vld [vmem:[%s291] ss:$8 sm:$0x3]
    %v294 = vlaneseq
    %v295 = vshrl.u32 %v294, 7
    %v296 = vsub.s32 0, %v295
    %v297 = vrot.slane %v292, %v296
    %v298 = vlaneseq
    %v299 = vshrl.u32 %v298, 7
    %v300 = vsub.s32 1, %v299
    %v301 = vrot.slane %v292, %v300
    %v320 = vunpack.c.l.b16 %v274
    %v321 = vunpack.c.h.b16 %v274
    %v322 = vunpack.c.l.b16 %v275
    %v323 = vunpack.c.h.b16 %v275
    %v324 = vunpack.c.l.b16 %v276
    %v325 = vunpack.c.h.b16 %v276
    %v326 = vunpack.c.l.b16 %v277
    %v327 = vunpack.c.h.b16 %v277
    %v328 = vunpack.c.l.b16 %v278
    %v329 = vunpack.c.h.b16 %v278
    %v330 = vunpack.c.l.b16 %v279
    %v331 = vunpack.c.h.b16 %v279
    %v332 = vunpack.c.l.b16 %v280
    %v333 = vunpack.c.h.b16 %v280
    %v334 = vunpack.c.l.b16 %v281
    %v335 = vunpack.c.h.b16 %v281
    %v336 = vunpack.c.l.b16 %v282
    %v337 = vunpack.c.h.b16 %v282
    %v338 = vunpack.c.l.b16 %v283
    %v339 = vunpack.c.h.b16 %v283
    %v340 = vunpack.c.l.b16 %v284
    %v341 = vunpack.c.h.b16 %v284
    %v342 = vunpack.c.l.b16 %v285
    %v343 = vunpack.c.h.b16 %v285
    %v344 = vunpack.c.l.b16 %v286
    %v345 = vunpack.c.h.b16 %v286
    %v346 = vunpack.c.l.b16 %v287
    %v347 = vunpack.c.h.b16 %v287
    %v348 = vunpack.c.l.b16 %v288
    %v349 = vunpack.c.h.b16 %v288
    %v350 = vunpack.c.l.b16 %v289
    %v351 = vunpack.c.h.b16 %v289
    %v352 = vpack.c.b16 %v322, %v320
    %v353 = vpack.c.b16 %v323, %v321
    %v354 = vpack.c.b16 %v326, %v324
    %v355 = vpack.c.b16 %v327, %v325
    %v356 = vpack.c.b16 %v330, %v328
    %v357 = vpack.c.b16 %v331, %v329
    %v358 = vpack.c.b16 %v334, %v332
    %v359 = vpack.c.b16 %v335, %v333
    %v360 = vpack.c.b16 %v338, %v336
    %v361 = vpack.c.b16 %v339, %v337
    %v362 = vpack.c.b16 %v342, %v340
    %v363 = vpack.c.b16 %v343, %v341
    %v364 = vpack.c.b16 %v346, %v344
    %v365 = vpack.c.b16 %v347, %v345
    %v366 = vpack.c.b16 %v350, %v348
    %v367 = vpack.c.b16 %v351, %v349
    %384 = vmatprep.subr.bf16.mxu0 %v353
    %385 = vmatpush1.bf16.msra.mxu0 %v352
    %386 = vmatprep.subr.bf16.mxu0 %v355
    %387 = vmatpush1.bf16.msra.mxu0 %v354
    %388 = vmatprep.subr.bf16.mxu0 %v357
    %389 = vmatpush1.bf16.msra.mxu0 %v356
    %390 = vmatprep.subr.bf16.mxu0 %v359
    %391 = vmatpush1.bf16.msra.mxu0 %v358
    %392 = vmatprep.subr.bf16.mxu0 %v361
    %393 = vmatpush1.bf16.msra.mxu0 %v360
    %394 = vmatprep.subr.bf16.mxu0 %v363
    %395 = vmatpush1.bf16.msra.mxu0 %v362
    %396 = vmatprep.subr.bf16.mxu0 %v365
    %397 = vmatpush1.bf16.msra.mxu0 %v364
    %398 = vmatprep.subr.bf16.mxu0 %v367
    %399 = vmatpush1.bf16.msra.mxu0 %v366
    %400 = vmatprep.subr.bf16.mxu0 0
    %401 = vmatpush1.bf16.msra.mxu0 0
    %402 = vmatprep.subr.bf16.mxu0 0
    %403 = vmatpush1.bf16.msra.mxu0 0
    %404 = vmatprep.subr.bf16.mxu0 0
    %405 = vmatpush1.bf16.msra.mxu0 0
    %406 = vmatprep.subr.bf16.mxu0 0
    %407 = vmatpush1.bf16.msra.mxu0 0
    %408 = vmatprep.subr.bf16.mxu0 0
    %409 = vmatpush1.bf16.msra.mxu0 0
    %410 = vmatprep.subr.bf16.mxu0 0
    %411 = vmatpush1.bf16.msra.mxu0 0
    %412 = vmatprep.subr.bf16.mxu0 0
    %413 = vmatpush1.bf16.msra.mxu0 0
    %414 = vmatprep.subr.bf16.mxu0 0
    %415 = vmatpush1.bf16.msra.mxu0 0
    %416 = vmatprep.mubr.bf16.mxu0 0
    %417 = vmatmul.mubr.bf16.gmra.mrb[0].mxu0 %v290
    %v418 = vpop.f32.mrb[0].mxu0
    %v419 = vadd.f32 %v297, %v418
    %v420 = vpop.f32.mrb[0].mxu0
    %v421 = vadd.f32 %v301, %v420
    %v422 = vpop.f32.mrb[0].mxu0
    %v423 = vpop.f32.mrb[0].mxu0
    %424 = vdwg.mxu0
    %v425 = vmax.f32 %v419, 0.0
    %v426 = vmax.f32 %v421, 0.0
    %v427 = vld [vmem:[#allocation2 + $0x190] sm:$0xff]
    %v428 = vld [vmem:[#allocation2 + $0x198] sm:$0xff]
    %v429 = vld [vmem:[#allocation2 + $0x1a0] sm:$0xff]
    %v430 = vld [vmem:[#allocation2 + $0x1a8] sm:$0xff]
    %v431 = vld [vmem:[#allocation2 + $0x1b0] sm:$0xff]
    %v432 = vld [vmem:[#allocation2 + $0x1b8] sm:$0xff]
    %v433 = vld [vmem:[#allocation2 + $0x1c0] sm:$0xff]
    %v434 = vld [vmem:[#allocation2 + $0x1c8] sm:$0xff]
    %v435 = vld [vmem:[#allocation2 + $0x1d0] sm:$0xff]
    %v436 = vld [vmem:[#allocation2 + $0x1d8] sm:$0xff]
    %v437 = vld [vmem:[#allocation2 + $0x1e0] sm:$0xff]
    %v438 = vld [vmem:[#allocation2 + $0x1e8] sm:$0xff]
    %v439 = vld [vmem:[#allocation2 + $0x1f0] sm:$0xff]
    %v440 = vld [vmem:[#allocation2 + $0x1f8] sm:$0xff]
    %v441 = vld [vmem:[#allocation2 + $0x200] sm:$0xff]
    %v442 = vld [vmem:[#allocation2 + $0x208] sm:$0xff]
    %v443 = vld [vmem:[#allocation2 + $0x210] sm:$0xff]
    %v444 = vld [vmem:[#allocation2 + $0x218] sm:$0xff]
    %v445 = vld [vmem:[#allocation2 + $0x220] sm:$0xff]
    %v446 = vld [vmem:[#allocation2 + $0x228] sm:$0xff]
    %v447 = vld [vmem:[#allocation2 + $0x230] sm:$0xff]
    %v448 = vld [vmem:[#allocation2 + $0x238] sm:$0xff]
    %v449 = vld [vmem:[#allocation2 + $0x240] sm:$0xff]
    %v450 = vld [vmem:[#allocation2 + $0x248] sm:$0xff]
    %v451 = vld [vmem:[#allocation2 + $0x250] sm:$0xff]
    %v452 = vld [vmem:[#allocation2 + $0x258] sm:$0xff]
    %v453 = vld [vmem:[#allocation2 + $0x260] sm:$0xff]
    %v454 = vld [vmem:[#allocation2 + $0x268] sm:$0xff]
    %v455 = vld [vmem:[#allocation2 + $0x270] sm:$0xff]
    %v456 = vld [vmem:[#allocation2 + $0x278] sm:$0xff]
    %v457 = vld [vmem:[#allocation2 + $0x280] sm:$0xff]
    %v458 = vld [vmem:[#allocation2 + $0x288] sm:$0xff]
    %v459 = vpack.c.bf16 %v425, %v425
    %v460 = vpack.c.bf16 %v426, %v426
    %s461 = scalar_lea.vmem %s2, 3
    %v462 = vld [vmem:[%s461] ss:$8 sm:$0x3]
    %v464 = vlaneseq
    %v465 = vshrl.u32 %v464, 7
    %v466 = vsub.s32 0, %v465
    %v467 = vrot.slane %v462, %v466
    %v468 = vlaneseq
    %v469 = vshrl.u32 %v468, 7
    %v470 = vsub.s32 1, %v469
    %v471 = vrot.slane %v462, %v470
    %v506 = vunpack.c.l.b16 %v427
    %v507 = vunpack.c.h.b16 %v427
    %v508 = vunpack.c.l.b16 %v428
    %v509 = vunpack.c.h.b16 %v428
    %v510 = vunpack.c.l.b16 %v429
    %v511 = vunpack.c.h.b16 %v429
    %v512 = vunpack.c.l.b16 %v430
    %v513 = vunpack.c.h.b16 %v430
    %v514 = vunpack.c.l.b16 %v431
    %v515 = vunpack.c.h.b16 %v431
    %v516 = vunpack.c.l.b16 %v432
    %v517 = vunpack.c.h.b16 %v432
    %v518 = vunpack.c.l.b16 %v433
    %v519 = vunpack.c.h.b16 %v433
    %v520 = vunpack.c.l.b16 %v434
    %v521 = vunpack.c.h.b16 %v434
    %v522 = vunpack.c.l.b16 %v435
    %v523 = vunpack.c.h.b16 %v435
    %v524 = vunpack.c.l.b16 %v436
    %v525 = vunpack.c.h.b16 %v436
    %v526 = vunpack.c.l.b16 %v437
    %v527 = vunpack.c.h.b16 %v437
    %v528 = vunpack.c.l.b16 %v438
    %v529 = vunpack.c.h.b16 %v438
    %v530 = vunpack.c.l.b16 %v439
    %v531 = vunpack.c.h.b16 %v439
    %v532 = vunpack.c.l.b16 %v440
    %v533 = vunpack.c.h.b16 %v440
    %v534 = vunpack.c.l.b16 %v441
    %v535 = vunpack.c.h.b16 %v441
    %v536 = vunpack.c.l.b16 %v442
    %v537 = vunpack.c.h.b16 %v442
    %v538 = vunpack.c.l.b16 %v443
    %v539 = vunpack.c.h.b16 %v443
    %v540 = vunpack.c.l.b16 %v444
    %v541 = vunpack.c.h.b16 %v444
    %v542 = vunpack.c.l.b16 %v445
    %v543 = vunpack.c.h.b16 %v445
    %v544 = vunpack.c.l.b16 %v446
    %v545 = vunpack.c.h.b16 %v446
    %v546 = vunpack.c.l.b16 %v447
    %v547 = vunpack.c.h.b16 %v447
    %v548 = vunpack.c.l.b16 %v448
    %v549 = vunpack.c.h.b16 %v448
    %v550 = vunpack.c.l.b16 %v449
    %v551 = vunpack.c.h.b16 %v449
    %v552 = vunpack.c.l.b16 %v450
    %v553 = vunpack.c.h.b16 %v450
    %v554 = vunpack.c.l.b16 %v451
    %v555 = vunpack.c.h.b16 %v451
    %v556 = vunpack.c.l.b16 %v452
    %v557 = vunpack.c.h.b16 %v452
    %v558 = vunpack.c.l.b16 %v453
    %v559 = vunpack.c.h.b16 %v453
    %v560 = vunpack.c.l.b16 %v454
    %v561 = vunpack.c.h.b16 %v454
    %v562 = vunpack.c.l.b16 %v455
    %v563 = vunpack.c.h.b16 %v455
    %v564 = vunpack.c.l.b16 %v456
    %v565 = vunpack.c.h.b16 %v456
    %v566 = vunpack.c.l.b16 %v457
    %v567 = vunpack.c.h.b16 %v457
    %v568 = vunpack.c.l.b16 %v458
    %v569 = vunpack.c.h.b16 %v458
    %v570 = vpack.c.b16 %v508, %v506
    %v571 = vpack.c.b16 %v509, %v507
    %v572 = vpack.c.b16 %v512, %v510
    %v573 = vpack.c.b16 %v513, %v511
    %v574 = vpack.c.b16 %v516, %v514
    %v575 = vpack.c.b16 %v517, %v515
    %v576 = vpack.c.b16 %v520, %v518
    %v577 = vpack.c.b16 %v521, %v519
    %v578 = vpack.c.b16 %v524, %v522
    %v579 = vpack.c.b16 %v525, %v523
    %v580 = vpack.c.b16 %v528, %v526
    %v581 = vpack.c.b16 %v529, %v527
    %v582 = vpack.c.b16 %v532, %v530
    %v583 = vpack.c.b16 %v533, %v531
    %v584 = vpack.c.b16 %v536, %v534
    %v585 = vpack.c.b16 %v537, %v535
    %v586 = vpack.c.b16 %v540, %v538
    %v587 = vpack.c.b16 %v541, %v539
    %v588 = vpack.c.b16 %v544, %v542
    %v589 = vpack.c.b16 %v545, %v543
    %v590 = vpack.c.b16 %v548, %v546
    %v591 = vpack.c.b16 %v549, %v547
    %v592 = vpack.c.b16 %v552, %v550
    %v593 = vpack.c.b16 %v553, %v551
    %v594 = vpack.c.b16 %v556, %v554
    %v595 = vpack.c.b16 %v557, %v555
    %v596 = vpack.c.b16 %v560, %v558
    %v597 = vpack.c.b16 %v561, %v559
    %v598 = vpack.c.b16 %v564, %v562
    %v599 = vpack.c.b16 %v565, %v563
    %v600 = vpack.c.b16 %v568, %v566
    %v601 = vpack.c.b16 %v569, %v567
    %634 = vmatprep.subr.bf16.mxu0 %v571
    %635 = vmatpush1.bf16.msra.mxu0 %v570
    %636 = vmatprep.subr.bf16.mxu0 %v573
    %637 = vmatpush1.bf16.msra.mxu0 %v572
    %638 = vmatprep.subr.bf16.mxu0 %v575
    %639 = vmatpush1.bf16.msra.mxu0 %v574
    %640 = vmatprep.subr.bf16.mxu0 %v577
    %641 = vmatpush1.bf16.msra.mxu0 %v576
    %642 = vmatprep.subr.bf16.mxu0 %v579
    %643 = vmatpush1.bf16.msra.mxu0 %v578
    %644 = vmatprep.subr.bf16.mxu0 %v581
    %645 = vmatpush1.bf16.msra.mxu0 %v580
    %646 = vmatprep.subr.bf16.mxu0 %v583
    %647 = vmatpush1.bf16.msra.mxu0 %v582
    %648 = vmatprep.subr.bf16.mxu0 %v585
    %649 = vmatpush1.bf16.msra.mxu0 %v584
    %650 = vmatprep.subr.bf16.mxu0 %v587
    %651 = vmatpush1.bf16.msra.mxu0 %v586
    %652 = vmatprep.subr.bf16.mxu0 %v589
    %653 = vmatpush1.bf16.msra.mxu0 %v588
    %654 = vmatprep.subr.bf16.mxu0 %v591
    %655 = vmatpush1.bf16.msra.mxu0 %v590
    %656 = vmatprep.subr.bf16.mxu0 %v593
    %657 = vmatpush1.bf16.msra.mxu0 %v592
    %658 = vmatprep.subr.bf16.mxu0 %v595
    %659 = vmatpush1.bf16.msra.mxu0 %v594
    %660 = vmatprep.subr.bf16.mxu0 %v597
    %661 = vmatpush1.bf16.msra.mxu0 %v596
    %662 = vmatprep.subr.bf16.mxu0 %v599
    %663 = vmatpush1.bf16.msra.mxu0 %v598
    %664 = vmatprep.subr.bf16.mxu0 %v601
    %665 = vmatpush1.bf16.msra.mxu0 %v600
    %666 = vmatprep.mubr.bf16.mxu0 %v460
    %667 = vmatmul.mubr.bf16.gmra.mrb[0].mxu0 %v459
    %v668 = vpop.f32.mrb[0].mxu0
    %v669 = vadd.f32 %v467, %v668
    %v670 = vpop.f32.mrb[0].mxu0
    %v671 = vadd.f32 %v471, %v670
    %v672 = vpop.f32.mrb[0].mxu0
    %v673 = vpop.f32.mrb[0].mxu0
    %674 = vdwg.mxu0
    %v675 = vmax.f32 %v669, 0.0
    %v676 = vmax.f32 %v671, 0.0
    %v677 = vld [vmem:[#allocation2 + $0x290] sm:$0xf]
    %v678 = vld [vmem:[#allocation2 + $0x298] sm:$0xf]
    %v679 = vld [vmem:[#allocation2 + $0x2a0] sm:$0xf]
    %v680 = vld [vmem:[#allocation2 + $0x2a8] sm:$0xf]
    %v681 = vld [vmem:[#allocation2 + $0x2b0] sm:$0xf]
    %v682 = vld [vmem:[#allocation2 + $0x2b8] sm:$0xf]
    %v683 = vld [vmem:[#allocation2 + $0x2c0] sm:$0xf]
    %v684 = vld [vmem:[#allocation2 + $0x2c8] sm:$0xf]
    %v685 = vld [vmem:[#allocation2 + $0x2d0] sm:$0xf]
    %v686 = vld [vmem:[#allocation2 + $0x2d8] sm:$0xf]
    %v687 = vld [vmem:[#allocation2 + $0x2e0] sm:$0xf]
    %v688 = vld [vmem:[#allocation2 + $0x2e8] sm:$0xf]
    %v689 = vld [vmem:[#allocation2 + $0x2f0] sm:$0xf]
    %v690 = vld [vmem:[#allocation2 + $0x2f8] sm:$0xf]
    %v691 = vld [vmem:[#allocation2 + $0x300] sm:$0xf]
    %v692 = vld [vmem:[#allocation2 + $0x308] sm:$0xf]
    %v693 = vld [vmem:[#allocation2 + $0x310] sm:$0xf]
    %v694 = vld [vmem:[#allocation2 + $0x318] sm:$0xf]
    %v695 = vld [vmem:[#allocation2 + $0x320] sm:$0xf]
    %v696 = vld [vmem:[#allocation2 + $0x328] sm:$0xf]
    %v697 = vld [vmem:[#allocation2 + $0x330] sm:$0xf]
    %v698 = vld [vmem:[#allocation2 + $0x338] sm:$0xf]
    %v699 = vld [vmem:[#allocation2 + $0x340] sm:$0xf]
    %v700 = vld [vmem:[#allocation2 + $0x348] sm:$0xf]
    %v701 = vld [vmem:[#allocation2 + $0x350] sm:$0xf]
    %v702 = vld [vmem:[#allocation2 + $0x358] sm:$0xf]
    %v703 = vld [vmem:[#allocation2 + $0x360] sm:$0xf]
    %v704 = vld [vmem:[#allocation2 + $0x368] sm:$0xf]
    %v705 = vld [vmem:[#allocation2 + $0x370] sm:$0xf]
    %v706 = vld [vmem:[#allocation2 + $0x378] sm:$0xf]
    %v707 = vld [vmem:[#allocation2 + $0x380] sm:$0xf]
    %v708 = vld [vmem:[#allocation2 + $0x388] sm:$0xf]
    %v709 = vpack.c.bf16 %v675, %v675
    %v710 = vpack.c.bf16 %v676, %v676
    %v711 = vld [vmem:[%s2 + $0x4] ss:$0 sm:$0xff]
    %v744 = vunpack.c.l.b16 %v677
    %v745 = vunpack.c.l.b16 %v678
    %v746 = vunpack.c.l.b16 %v679
    %v747 = vunpack.c.l.b16 %v680
    %v748 = vunpack.c.l.b16 %v681
    %v749 = vunpack.c.l.b16 %v682
    %v750 = vunpack.c.l.b16 %v683
    %v751 = vunpack.c.l.b16 %v684
    %v752 = vunpack.c.l.b16 %v685
    %v753 = vunpack.c.l.b16 %v686
    %v754 = vunpack.c.l.b16 %v687
    %v755 = vunpack.c.l.b16 %v688
    %v756 = vunpack.c.l.b16 %v689
    %v757 = vunpack.c.l.b16 %v690
    %v758 = vunpack.c.l.b16 %v691
    %v759 = vunpack.c.l.b16 %v692
    %v760 = vunpack.c.l.b16 %v693
    %v761 = vunpack.c.l.b16 %v694
    %v762 = vunpack.c.l.b16 %v695
    %v763 = vunpack.c.l.b16 %v696
    %v764 = vunpack.c.l.b16 %v697
    %v765 = vunpack.c.l.b16 %v698
    %v766 = vunpack.c.l.b16 %v699
    %v767 = vunpack.c.l.b16 %v700
    %v768 = vunpack.c.l.b16 %v701
    %v769 = vunpack.c.l.b16 %v702
    %v770 = vunpack.c.l.b16 %v703
    %v771 = vunpack.c.l.b16 %v704
    %v772 = vunpack.c.l.b16 %v705
    %v773 = vunpack.c.l.b16 %v706
    %v774 = vunpack.c.l.b16 %v707
    %v775 = vunpack.c.l.b16 %v708
    %v776 = vpack.c.b16 %v745, %v744
    %v777 = vpack.c.b16 %v747, %v746
    %v778 = vpack.c.b16 %v749, %v748
    %v779 = vpack.c.b16 %v751, %v750
    %v780 = vpack.c.b16 %v753, %v752
    %v781 = vpack.c.b16 %v755, %v754
    %v782 = vpack.c.b16 %v757, %v756
    %v783 = vpack.c.b16 %v759, %v758
    %v784 = vpack.c.b16 %v761, %v760
    %v785 = vpack.c.b16 %v763, %v762
    %v786 = vpack.c.b16 %v765, %v764
    %v787 = vpack.c.b16 %v767, %v766
    %v788 = vpack.c.b16 %v769, %v768
    %v789 = vpack.c.b16 %v771, %v770
    %v790 = vpack.c.b16 %v773, %v772
    %v791 = vpack.c.b16 %v775, %v774
    %808 = vmatprep.subr.bf16.mxu0 0
    %809 = vmatpush1.bf16.msra.mxu0 %v776
    %810 = vmatprep.subr.bf16.mxu0 0
    %811 = vmatpush1.bf16.msra.mxu0 %v777
    %812 = vmatprep.subr.bf16.mxu0 0
    %813 = vmatpush1.bf16.msra.mxu0 %v778
    %814 = vmatprep.subr.bf16.mxu0 0
    %815 = vmatpush1.bf16.msra.mxu0 %v779
    %816 = vmatprep.subr.bf16.mxu0 0
    %817 = vmatpush1.bf16.msra.mxu0 %v780
    %818 = vmatprep.subr.bf16.mxu0 0
    %819 = vmatpush1.bf16.msra.mxu0 %v781
    %820 = vmatprep.subr.bf16.mxu0 0
    %821 = vmatpush1.bf16.msra.mxu0 %v782
    %822 = vmatprep.subr.bf16.mxu0 0
    %823 = vmatpush1.bf16.msra.mxu0 %v783
    %824 = vmatprep.subr.bf16.mxu0 0
    %825 = vmatpush1.bf16.msra.mxu0 %v784
    %826 = vmatprep.subr.bf16.mxu0 0
    %827 = vmatpush1.bf16.msra.mxu0 %v785
    %828 = vmatprep.subr.bf16.mxu0 0
    %829 = vmatpush1.bf16.msra.mxu0 %v786
    %830 = vmatprep.subr.bf16.mxu0 0
    %831 = vmatpush1.bf16.msra.mxu0 %v787
    %832 = vmatprep.subr.bf16.mxu0 0
    %833 = vmatpush1.bf16.msra.mxu0 %v788
    %834 = vmatprep.subr.bf16.mxu0 0
    %835 = vmatpush1.bf16.msra.mxu0 %v789
    %836 = vmatprep.subr.bf16.mxu0 0
    %837 = vmatpush1.bf16.msra.mxu0 %v790
    %838 = vmatprep.subr.bf16.mxu0 0
    %839 = vmatpush1.bf16.msra.mxu0 %v791
    %840 = vmatprep.mubr.bf16.mxu0 %v710
    %841 = vmatmul.mubr.bf16.gmra.mrb[0].mxu0 %v709
    %v842 = vpop.f32.mrb[0].mxu0
    %v843 = vadd.f32 %v711, %v842
    %v844 = vpop.f32.mrb[0].mxu0
    %v845 = vpop.f32.mrb[0].mxu0
    %v846 = vpop.f32.mrb[0].mxu0
    %847 = vdwg.mxu0
    %848 = vst [vmem:[%s3] sm:$0xff] %v843
    // Predicated region
    $region18: #{deep_balanced_forward.1} parent=1 // pred_check
      _
    $region19: #{deep_balanced_forward.1} parent=1 // pred_check_branch
      %850 = sbr.rel (0) target = $region21
    $region20: #{deep_balanced_forward.1} parent=1 // pred_region
      _
    $region21: #{deep_balanced_forward.1} parent=1 // pred_fallthru
      _
    // Predicated region
    $region22: #{deep_balanced_forward.1} parent=1 // pred_check
      _
    $region23: #{deep_balanced_forward.1} parent=1 // pred_check_branch
      %852 = sbr.rel (0) target = $region25
    $region24: #{deep_balanced_forward.1} parent=1 // pred_region
      _
    $region25: #{deep_balanced_forward.1} parent=1 // pred_fallthru
      _
    %853 = vsyncpa [#allocation3], 1

</llo_original>
